<compile_context>
chip_gen: v6e
topology: v6e:2x2x1
jax: 0.10.0
libtpu: 0.0.40
codegen_flags: <defaults>
</compile_context>

<pallas_src>
import numpy as np
import jax
import jax.numpy as jnp
from jax.experimental import pallas as pl
from jax.experimental.pallas import tpu as pltpu


# ----------------------------- Pallas kernel --------------------------------
_MAC_MAX_CIN = 8  # below this, do 1x1 convs as unrolled VPU broadcast-MACs


def _pointwise_matmul(w, y):
    """(Co,Ci) x (Ci,L) -> (Co,L); VPU MAC path for tiny Ci, MXU otherwise."""
    co, ci = w.shape
    if ci <= _MAC_MAX_CIN:
        out = w[:, 0:1] * y[0:1, :]
        for c in range(1, ci):
            out = out + w[:, c:c + 1] * y[c:c + 1, :]
        return out
    return jnp.dot(w, y, preferred_element_type=jnp.float32)


def make_segment_kernel(W):
    def kernel(x_ref, mask_ref, kdw_ref, b1_ref, w2_ref, b2_ref,
               w3_ref, b3_ref, out_ref):
        # x_ref: (C, chunk) channel-major slab; chunk = (batch group)*H*W.
        x = x_ref[...]                               # (C, chunk) f32
        kdw = kdw_ref[...]                           # (C, 9) depthwise taps (BN1 folded)
        chunk = x.shape[-1]

        # depthwise 3x3 conv, padding=1, stride=1:
        #   center tap initializes the accumulator (mask-free),
        #   the other 8 taps are static rolls * precomputed border masks.
        acc = x * kdw[:, 4:5]
        for dh in (-1, 0, 1):
            for dw in (-1, 0, 1):
                if dh == 0 and dw == 0:
                    continue
                tap = (dh + 1) * 3 + (dw + 1)
                off = dh * W + dw
                shifted = pltpu.roll(x, shift=(-off) % chunk, axis=1)
                shifted = shifted * mask_ref[tap:tap + 1, :]   # (1,chunk) bcast
                acc = acc + shifted * kdw[:, tap:tap + 1]      # (C,1) bcast

        # BN1 (folded) + ReLU
        y1 = jnp.maximum(acc + b1_ref[...], 0.0)               # (C, chunk)

        # 1x1 conv (BN2 folded) + ReLU
        y2 = jnp.maximum(_pointwise_matmul(w2_ref[...], y1) + b2_ref[...], 0.0)

        # Dropout (eval = identity) then final 1x1 conv with bias
        z = _pointwise_matmul(w3_ref[...], y2) + b3_ref[...]   # (ncls, chunk)

        out_ref[...] = z.astype(out_ref.dtype)

    return kernel


# --------------------- host-side constant mask construction -----------------
def build_border_masks(H, W, n_imgs_per_block):
    """(9, n_imgs_per_block*H*W) float32 masks; 1 where the tap is in-bounds."""
    HW = H * W
    idx = np.arange(HW)
    col = idx % W
    row = idx // W
    masks = np.ones((9, HW), np.float32)
    for dh in (-1, 0, 1):
        for dw in (-1, 0, 1):
            tap = (dh + 1) * 3 + (dw + 1)
            m = np.ones(HW, dtype=bool)
            if dw == -1:
                m &= col >= 1
            if dw == 1:
                m &= col <= W - 2
            if dh == -1:
                m &= row >= 1
            if dh == 1:
                m &= row <= H - 2
            masks[tap] = m.astype(np.float32)
    return np.tile(masks, (1, n_imgs_per_block))


# --------------------------------- wrapper -----------------------------------
def segment_forward(x_nchw, folded_params):
    """x_nchw: (N, C, H, W) float32; folded_params from fold_params()."""
    N, C, H, W = x_nchw.shape
    HW = H * W
    kdw, b1, w2, b2, w3, b3 = folded_params
    ncls = w3.shape[0]

    # Keep >=2 parallel grid steps for v7x megacore when the batch allows it;
    # otherwise a single step over the whole batch-folded slab.
    G = 2 if (N % 2 == 0 and N >= 2) else 1
    NB = N // G
    chunk = NB * HW                                   # lanes per grid step

    # NCHW -> (C, N*HW): channel-major so batch+spatial fold into lanes.
    x_cl = jnp.transpose(x_nchw.reshape(N, C, HW), (1, 0, 2)).reshape(C, N * HW)
    masks = jnp.asarray(build_border_masks(H, W, NB))  # (9, chunk), constant

    out = pl.pallas_call(
        make_segment_kernel(W),
        out_shape=jax.ShapeDtypeStruct((ncls, N * HW), jnp.float32),
        grid=(G,),
        in_specs=[
            pl.BlockSpec((C, chunk), lambda g: (0, g)),      # activation slab
            pl.BlockSpec((9, chunk), lambda g: (0, 0)),      # border masks (const)
            pl.BlockSpec((C, 9), lambda g: (0, 0)),          # depthwise taps (BN folded)
            pl.BlockSpec((C, 1), lambda g: (0, 0)),          # BN1 shift
            pl.BlockSpec((C, C), lambda g: (0, 0)),          # 1x1 conv weight (BN folded)
            pl.BlockSpec((C, 1), lambda g: (0, 0)),          # BN2 shift
            pl.BlockSpec((ncls, C), lambda g: (0, 0)),       # classifier weight
            pl.BlockSpec((ncls, 1), lambda g: (0, 0)),       # classifier bias
        ],
        out_specs=pl.BlockSpec((ncls, chunk), lambda g: (0, g)),
        compiler_params=pltpu.CompilerParams(dimension_semantics=("parallel",)),
    )(x_cl, masks, kdw, b1, w2, b2, w3, b3)

    # (ncls, N*HW) -> (N, ncls, H, W); tiny XLA transpose outside the kernel.
    return jnp.transpose(out.reshape(ncls, N, HW), (1, 0, 2)).reshape(N, ncls, H, W)


# ------------------------- host-side parameter glue -------------------------
def fold_params(raw, eps=1e-5):
    """Fold inference-mode BN into conv weights, channel-major layout."""
    dw_w, g1, be1, m1, v1, pw_w, g2, be2, m2, v2, w3, b3 = raw
    C = dw_w.shape[0]

    s1 = g1 / jnp.sqrt(v1 + eps)
    kdw = dw_w.reshape(C, 9) * s1[:, None]            # (C, 9)
    b1 = (be1 - m1 * s1).reshape(C, 1)

    s2 = g2 / jnp.sqrt(v2 + eps)
    w2 = pw_w[:, :, 0, 0] * s2[:, None]               # (Cout=C, Cin=C)
    b2 = (be2 - m2 * s2).reshape(C, 1)

    w3k = w3[:, :, 0, 0]                               # (ncls, C)
    b3k = b3.reshape(-1, 1)                            # (ncls, 1)
    return kdw, b1, w2, b2, w3k, b3k


# --------------------------- pure-JAX reference ------------------------------
def _bn_inf(x, gamma, beta, mean, var, eps):
    inv = gamma / jnp.sqrt(var + eps)
    return x * inv[None, :, None, None] + (beta - mean * inv)[None, :, None, None]


def reference(x, raw, eps=1e-5):
    dw_w, g1, be1, m1, v1, pw_w, g2, be2, m2, v2, w3, b3 = raw
    C = x.shape[1]
    dn = ('NCHW', 'OIHW', 'NCHW')
    hp = jax.lax.Precision.HIGHEST
    y = jax.lax.conv_general_dilated(x, dw_w, (1, 1), 'SAME',
                                     dimension_numbers=dn,
                                     feature_group_count=C, precision=hp)
    y = jnp.maximum(_bn_inf(y, g1, be1, m1, v1, eps), 0.0)
    y = jax.lax.conv_general_dilated(y, pw_w, (1, 1), 'SAME',
                                     dimension_numbers=dn, precision=hp)
    y = jnp.maximum(_bn_inf(y, g2, be2, m2, v2, eps), 0.0)
    y = jax.lax.conv_general_dilated(y, w3, (1, 1), 'SAME',
                                     dimension_numbers=dn, precision=hp)
    return y + b3[None, :, None, None]


# ----------------------------------- main ------------------------------------
if __name__ == "__main__":
    N, C, H, W = 2, 4, 16, 16
    num_classes = 3
    eps = 1e-5

    key = jax.random.PRNGKey(0)
    ks = jax.random.split(key, 16)

    # input
    x = jax.random.normal(ks[0], (N, C, H, W), jnp.float32)

    # DsConv: depthwise Conv2d(C, C, 3, 1, 1, groups=C, bias=False) + BN(C)
    dw_w = jax.random.normal(ks[1], (C, 1, 3, 3), jnp.float32) * 0.5
    g1 = 0.5 + jax.random.uniform(ks[2], (C,), jnp.float32)
    be1 = jax.random.normal(ks[3], (C,), jnp.float32) * 0.1
    m1 = jax.random.normal(ks[4], (C,), jnp.float32) * 0.1
    v1 = 0.5 + jax.random.uniform(ks[5], (C,), jnp.float32)

    # DsConv: pointwise Conv2d(C, C, 1, bias=False) + BN(C)
    pw_w = jax.random.normal(ks[6], (C, C, 1, 1), jnp.float32) * 0.5
    g2 = 0.5 + jax.random.uniform(ks[7], (C,), jnp.float32)
    be2 = jax.random.normal(ks[8], (C,), jnp.float32) * 0.1
    m2 = jax.random.normal(ks[9], (C,), jnp.float32) * 0.1
    v2 = 0.5 + jax.random.uniform(ks[10], (C,), jnp.float32)

    # classifier: Dropout(0.1) (eval = identity) + Conv2d(C, num_classes, 1, bias=True)
    w3 = jax.random.normal(ks[11], (num_classes, C, 1, 1), jnp.float32) * 0.5
    b3 = jax.random.normal(ks[12], (num_classes,), jnp.float32) * 0.1

    raw = (dw_w, g1, be1, m1, v1, pw_w, g2, be2, m2, v2, w3, b3)
    folded = fold_params(raw, eps)

    out = segment_forward(x, folded)
    out = jax.block_until_ready(out)

    ref = reference(x, raw, eps)
    assert out.shape == (N, num_classes, H, W)
    np.testing.assert_allclose(np.asarray(out), np.asarray(ref), rtol=1e-4, atol=1e-4)

    print("KERNEL_OK")
</pallas_src>

<mosaic_0001>
module attributes {stable_mosaic.version = 11 : i64} {
  func.func @kernel(%arg0: i32, %arg1: memref<4x256xf32, #tpu.memory_space<vmem>>, %arg2: memref<9x256xf32, #tpu.memory_space<vmem>>, %arg3: memref<4x9xf32, #tpu.memory_space<vmem>>, %arg4: memref<4x1xf32, #tpu.memory_space<vmem>>, %arg5: memref<4x4xf32, #tpu.memory_space<vmem>>, %arg6: memref<4x1xf32, #tpu.memory_space<vmem>>, %arg7: memref<3x4xf32, #tpu.memory_space<vmem>>, %arg8: memref<3x1xf32, #tpu.memory_space<vmem>>, %arg9: memref<3x256xf32, #tpu.memory_space<vmem>>) attributes {dimension_semantics = [#tpu.dimension_semantics<parallel>], iteration_bounds = array<i64: 2>, scalar_prefetch = 0 : i64, scratch_operands = 0 : i64, tpu.core_type = #tpu.core_type<tc>, window_params = [{transform_indices = @transform_0, window_bounds = array<i64: 4, 256>}, {pipeline_mode = #tpu.pipeline_mode<synchronous>, transform_indices = @transform_1, window_bounds = array<i64: 9, 256>}, {pipeline_mode = #tpu.pipeline_mode<synchronous>, transform_indices = @transform_2, window_bounds = array<i64: 4, 9>}, {pipeline_mode = #tpu.pipeline_mode<synchronous>, transform_indices = @transform_3, window_bounds = array<i64: 4, 1>}, {pipeline_mode = #tpu.pipeline_mode<synchronous>, transform_indices = @transform_4, window_bounds = array<i64: 4, 4>}, {pipeline_mode = #tpu.pipeline_mode<synchronous>, transform_indices = @transform_5, window_bounds = array<i64: 4, 1>}, {pipeline_mode = #tpu.pipeline_mode<synchronous>, transform_indices = @transform_6, window_bounds = array<i64: 3, 4>}, {pipeline_mode = #tpu.pipeline_mode<synchronous>, transform_indices = @transform_7, window_bounds = array<i64: 3, 1>}, {transform_indices = @transform_8, window_bounds = array<i64: 3, 256>}]} {
    %c0 = arith.constant 0 : index
    %c0_0 = arith.constant 0 : index
    %0 = vector.load %arg1[%c0, %c0_0] : memref<4x256xf32, #tpu.memory_space<vmem>>, vector<4x256xf32>
    %c0_1 = arith.constant 0 : index
    %c0_2 = arith.constant 0 : index
    %1 = vector.load %arg3[%c0_1, %c0_2] : memref<4x9xf32, #tpu.memory_space<vmem>>, vector<4x9xf32>
    %2 = vector.extract_strided_slice %1 {offsets = [0, 4], sizes = [4, 1], strides = [1, 1]} : vector<4x9xf32> to vector<4x1xf32>
    %3 = vector.broadcast %2 : vector<4x1xf32> to vector<4x256xf32>
    %4 = arith.mulf %0, %3 : vector<4x256xf32>
    %c17_i32 = arith.constant 17 : i32
    %5 = tpu.dynamic_rotate %0 by %c17_i32 dim 1 : vector<4x256xf32>, i32 -> vector<4x256xf32>
    %c0_3 = arith.constant 0 : index
    %c0_4 = arith.constant 0 : index
    %6 = vector.load %arg2[%c0_3, %c0_4] : memref<9x256xf32, #tpu.memory_space<vmem>>, vector<1x256xf32>
    %7 = vector.broadcast %6 : vector<1x256xf32> to vector<4x256xf32>
    %8 = arith.mulf %5, %7 : vector<4x256xf32>
    %9 = vector.extract_strided_slice %1 {offsets = [0, 0], sizes = [4, 1], strides = [1, 1]} : vector<4x9xf32> to vector<4x1xf32>
    %10 = vector.broadcast %9 : vector<4x1xf32> to vector<4x256xf32>
    %11 = arith.mulf %8, %10 : vector<4x256xf32>
    %12 = arith.addf %4, %11 : vector<4x256xf32>
    %c16_i32 = arith.constant 16 : i32
    %13 = tpu.dynamic_rotate %0 by %c16_i32 dim 1 : vector<4x256xf32>, i32 -> vector<4x256xf32>
    %c1 = arith.constant 1 : index
    %c0_5 = arith.constant 0 : index
    %14 = vector.load %arg2[%c1, %c0_5] : memref<9x256xf32, #tpu.memory_space<vmem>>, vector<1x256xf32>
    %15 = vector.broadcast %14 : vector<1x256xf32> to vector<4x256xf32>
    %16 = arith.mulf %13, %15 : vector<4x256xf32>
    %17 = vector.extract_strided_slice %1 {offsets = [0, 1], sizes = [4, 1], strides = [1, 1]} : vector<4x9xf32> to vector<4x1xf32>
    %18 = vector.broadcast %17 : vector<4x1xf32> to vector<4x256xf32>
    %19 = arith.mulf %16, %18 : vector<4x256xf32>
    %20 = arith.addf %12, %19 : vector<4x256xf32>
    %c15_i32 = arith.constant 15 : i32
    %21 = tpu.dynamic_rotate %0 by %c15_i32 dim 1 : vector<4x256xf32>, i32 -> vector<4x256xf32>
    %c2 = arith.constant 2 : index
    %c0_6 = arith.constant 0 : index
    %22 = vector.load %arg2[%c2, %c0_6] : memref<9x256xf32, #tpu.memory_space<vmem>>, vector<1x256xf32>
    %23 = vector.broadcast %22 : vector<1x256xf32> to vector<4x256xf32>
    %24 = arith.mulf %21, %23 : vector<4x256xf32>
    %25 = vector.extract_strided_slice %1 {offsets = [0, 2], sizes = [4, 1], strides = [1, 1]} : vector<4x9xf32> to vector<4x1xf32>
    %26 = vector.broadcast %25 : vector<4x1xf32> to vector<4x256xf32>
    %27 = arith.mulf %24, %26 : vector<4x256xf32>
    %28 = arith.addf %20, %27 : vector<4x256xf32>
    %c1_i32 = arith.constant 1 : i32
    %29 = tpu.dynamic_rotate %0 by %c1_i32 dim 1 : vector<4x256xf32>, i32 -> vector<4x256xf32>
    %c3 = arith.constant 3 : index
    %c0_7 = arith.constant 0 : index
    %30 = vector.load %arg2[%c3, %c0_7] : memref<9x256xf32, #tpu.memory_space<vmem>>, vector<1x256xf32>
    %31 = vector.broadcast %30 : vector<1x256xf32> to vector<4x256xf32>
    %32 = arith.mulf %29, %31 : vector<4x256xf32>
    %33 = vector.extract_strided_slice %1 {offsets = [0, 3], sizes = [4, 1], strides = [1, 1]} : vector<4x9xf32> to vector<4x1xf32>
    %34 = vector.broadcast %33 : vector<4x1xf32> to vector<4x256xf32>
    %35 = arith.mulf %32, %34 : vector<4x256xf32>
    %36 = arith.addf %28, %35 : vector<4x256xf32>
    %c255_i32 = arith.constant 255 : i32
    %37 = tpu.dynamic_rotate %0 by %c255_i32 dim 1 : vector<4x256xf32>, i32 -> vector<4x256xf32>
    %c5 = arith.constant 5 : index
    %c0_8 = arith.constant 0 : index
    %38 = vector.load %arg2[%c5, %c0_8] : memref<9x256xf32, #tpu.memory_space<vmem>>, vector<1x256xf32>
    %39 = vector.broadcast %38 : vector<1x256xf32> to vector<4x256xf32>
    %40 = arith.mulf %37, %39 : vector<4x256xf32>
    %41 = vector.extract_strided_slice %1 {offsets = [0, 5], sizes = [4, 1], strides = [1, 1]} : vector<4x9xf32> to vector<4x1xf32>
    %42 = vector.broadcast %41 : vector<4x1xf32> to vector<4x256xf32>
    %43 = arith.mulf %40, %42 : vector<4x256xf32>
    %44 = arith.addf %36, %43 : vector<4x256xf32>
    %c241_i32 = arith.constant 241 : i32
    %45 = tpu.dynamic_rotate %0 by %c241_i32 dim 1 : vector<4x256xf32>, i32 -> vector<4x256xf32>
    %c6 = arith.constant 6 : index
    %c0_9 = arith.constant 0 : index
    %46 = vector.load %arg2[%c6, %c0_9] : memref<9x256xf32, #tpu.memory_space<vmem>>, vector<1x256xf32>
    %47 = vector.broadcast %46 : vector<1x256xf32> to vector<4x256xf32>
    %48 = arith.mulf %45, %47 : vector<4x256xf32>
    %49 = vector.extract_strided_slice %1 {offsets = [0, 6], sizes = [4, 1], strides = [1, 1]} : vector<4x9xf32> to vector<4x1xf32>
    %50 = vector.broadcast %49 : vector<4x1xf32> to vector<4x256xf32>
    %51 = arith.mulf %48, %50 : vector<4x256xf32>
    %52 = arith.addf %44, %51 : vector<4x256xf32>
    %c240_i32 = arith.constant 240 : i32
    %53 = tpu.dynamic_rotate %0 by %c240_i32 dim 1 : vector<4x256xf32>, i32 -> vector<4x256xf32>
    %c7 = arith.constant 7 : index
    %c0_10 = arith.constant 0 : index
    %54 = vector.load %arg2[%c7, %c0_10] : memref<9x256xf32, #tpu.memory_space<vmem>>, vector<1x256xf32>
    %55 = vector.broadcast %54 : vector<1x256xf32> to vector<4x256xf32>
    %56 = arith.mulf %53, %55 : vector<4x256xf32>
    %57 = vector.extract_strided_slice %1 {offsets = [0, 7], sizes = [4, 1], strides = [1, 1]} : vector<4x9xf32> to vector<4x1xf32>
    %58 = vector.broadcast %57 : vector<4x1xf32> to vector<4x256xf32>
    %59 = arith.mulf %56, %58 : vector<4x256xf32>
    %60 = arith.addf %52, %59 : vector<4x256xf32>
    %c239_i32 = arith.constant 239 : i32
    %61 = tpu.dynamic_rotate %0 by %c239_i32 dim 1 : vector<4x256xf32>, i32 -> vector<4x256xf32>
    %c8 = arith.constant 8 : index
    %c0_11 = arith.constant 0 : index
    %62 = vector.load %arg2[%c8, %c0_11] : memref<9x256xf32, #tpu.memory_space<vmem>>, vector<1x256xf32>
    %63 = vector.broadcast %62 : vector<1x256xf32> to vector<4x256xf32>
    %64 = arith.mulf %61, %63 : vector<4x256xf32>
    %65 = vector.extract_strided_slice %1 {offsets = [0, 8], sizes = [4, 1], strides = [1, 1]} : vector<4x9xf32> to vector<4x1xf32>
    %66 = vector.broadcast %65 : vector<4x1xf32> to vector<4x256xf32>
    %67 = arith.mulf %64, %66 : vector<4x256xf32>
    %68 = arith.addf %60, %67 : vector<4x256xf32>
    %c0_12 = arith.constant 0 : index
    %c0_13 = arith.constant 0 : index
    %69 = vector.load %arg4[%c0_12, %c0_13] : memref<4x1xf32, #tpu.memory_space<vmem>>, vector<4x1xf32>
    %70 = vector.broadcast %69 : vector<4x1xf32> to vector<4x256xf32>
    %71 = arith.addf %68, %70 : vector<4x256xf32>
    %cst = arith.constant 0.000000e+00 : f32
    %72 = vector.broadcast %cst : f32 to vector<4x256xf32>
    %73 = arith.maximumf %71, %72 : vector<4x256xf32>
    %c0_14 = arith.constant 0 : index
    %c0_15 = arith.constant 0 : index
    %74 = vector.load %arg5[%c0_14, %c0_15] : memref<4x4xf32, #tpu.memory_space<vmem>>, vector<4x4xf32>
    %75 = vector.extract_strided_slice %74 {offsets = [0, 0], sizes = [4, 1], strides = [1, 1]} : vector<4x4xf32> to vector<4x1xf32>
    %76 = vector.extract_strided_slice %73 {offsets = [0, 0], sizes = [1, 256], strides = [1, 1]} : vector<4x256xf32> to vector<1x256xf32>
    %77 = vector.broadcast %75 : vector<4x1xf32> to vector<4x256xf32>
    %78 = vector.broadcast %76 : vector<1x256xf32> to vector<4x256xf32>
    %79 = arith.mulf %77, %78 : vector<4x256xf32>
    %80 = vector.extract_strided_slice %74 {offsets = [0, 1], sizes = [4, 1], strides = [1, 1]} : vector<4x4xf32> to vector<4x1xf32>
    %81 = vector.extract_strided_slice %73 {offsets = [1, 0], sizes = [1, 256], strides = [1, 1]} : vector<4x256xf32> to vector<1x256xf32>
    %82 = vector.broadcast %80 : vector<4x1xf32> to vector<4x256xf32>
    %83 = vector.broadcast %81 : vector<1x256xf32> to vector<4x256xf32>
    %84 = arith.mulf %82, %83 : vector<4x256xf32>
    %85 = arith.addf %79, %84 : vector<4x256xf32>
    %86 = vector.extract_strided_slice %74 {offsets = [0, 2], sizes = [4, 1], strides = [1, 1]} : vector<4x4xf32> to vector<4x1xf32>
    %87 = vector.extract_strided_slice %73 {offsets = [2, 0], sizes = [1, 256], strides = [1, 1]} : vector<4x256xf32> to vector<1x256xf32>
    %88 = vector.broadcast %86 : vector<4x1xf32> to vector<4x256xf32>
    %89 = vector.broadcast %87 : vector<1x256xf32> to vector<4x256xf32>
    %90 = arith.mulf %88, %89 : vector<4x256xf32>
    %91 = arith.addf %85, %90 : vector<4x256xf32>
    %92 = vector.extract_strided_slice %74 {offsets = [0, 3], sizes = [4, 1], strides = [1, 1]} : vector<4x4xf32> to vector<4x1xf32>
    %93 = vector.extract_strided_slice %73 {offsets = [3, 0], sizes = [1, 256], strides = [1, 1]} : vector<4x256xf32> to vector<1x256xf32>
    %94 = vector.broadcast %92 : vector<4x1xf32> to vector<4x256xf32>
    %95 = vector.broadcast %93 : vector<1x256xf32> to vector<4x256xf32>
    %96 = arith.mulf %94, %95 : vector<4x256xf32>
    %97 = arith.addf %91, %96 : vector<4x256xf32>
    %c0_16 = arith.constant 0 : index
    %c0_17 = arith.constant 0 : index
    %98 = vector.load %arg6[%c0_16, %c0_17] : memref<4x1xf32, #tpu.memory_space<vmem>>, vector<4x1xf32>
    %99 = vector.broadcast %98 : vector<4x1xf32> to vector<4x256xf32>
    %100 = arith.addf %97, %99 : vector<4x256xf32>
    %cst_18 = arith.constant 0.000000e+00 : f32
    %101 = vector.broadcast %cst_18 : f32 to vector<4x256xf32>
    %102 = arith.maximumf %100, %101 : vector<4x256xf32>
    %c0_19 = arith.constant 0 : index
    %c0_20 = arith.constant 0 : index
    %103 = vector.load %arg7[%c0_19, %c0_20] : memref<3x4xf32, #tpu.memory_space<vmem>>, vector<3x4xf32>
    %104 = vector.extract_strided_slice %103 {offsets = [0, 0], sizes = [3, 1], strides = [1, 1]} : vector<3x4xf32> to vector<3x1xf32>
    %105 = vector.extract_strided_slice %102 {offsets = [0, 0], sizes = [1, 256], strides = [1, 1]} : vector<4x256xf32> to vector<1x256xf32>
    %106 = vector.broadcast %104 : vector<3x1xf32> to vector<3x256xf32>
    %107 = vector.broadcast %105 : vector<1x256xf32> to vector<3x256xf32>
    %108 = arith.mulf %106, %107 : vector<3x256xf32>
    %109 = vector.extract_strided_slice %103 {offsets = [0, 1], sizes = [3, 1], strides = [1, 1]} : vector<3x4xf32> to vector<3x1xf32>
    %110 = vector.extract_strided_slice %102 {offsets = [1, 0], sizes = [1, 256], strides = [1, 1]} : vector<4x256xf32> to vector<1x256xf32>
    %111 = vector.broadcast %109 : vector<3x1xf32> to vector<3x256xf32>
    %112 = vector.broadcast %110 : vector<1x256xf32> to vector<3x256xf32>
    %113 = arith.mulf %111, %112 : vector<3x256xf32>
    %114 = arith.addf %108, %113 : vector<3x256xf32>
    %115 = vector.extract_strided_slice %103 {offsets = [0, 2], sizes = [3, 1], strides = [1, 1]} : vector<3x4xf32> to vector<3x1xf32>
    %116 = vector.extract_strided_slice %102 {offsets = [2, 0], sizes = [1, 256], strides = [1, 1]} : vector<4x256xf32> to vector<1x256xf32>
    %117 = vector.broadcast %115 : vector<3x1xf32> to vector<3x256xf32>
    %118 = vector.broadcast %116 : vector<1x256xf32> to vector<3x256xf32>
    %119 = arith.mulf %117, %118 : vector<3x256xf32>
    %120 = arith.addf %114, %119 : vector<3x256xf32>
    %121 = vector.extract_strided_slice %103 {offsets = [0, 3], sizes = [3, 1], strides = [1, 1]} : vector<3x4xf32> to vector<3x1xf32>
    %122 = vector.extract_strided_slice %102 {offsets = [3, 0], sizes = [1, 256], strides = [1, 1]} : vector<4x256xf32> to vector<1x256xf32>
    %123 = vector.broadcast %121 : vector<3x1xf32> to vector<3x256xf32>
    %124 = vector.broadcast %122 : vector<1x256xf32> to vector<3x256xf32>
    %125 = arith.mulf %123, %124 : vector<3x256xf32>
    %126 = arith.addf %120, %125 : vector<3x256xf32>
    %c0_21 = arith.constant 0 : index
    %c0_22 = arith.constant 0 : index
    %127 = vector.load %arg8[%c0_21, %c0_22] : memref<3x1xf32, #tpu.memory_space<vmem>>, vector<3x1xf32>
    %128 = vector.broadcast %127 : vector<3x1xf32> to vector<3x256xf32>
    %129 = arith.addf %126, %128 : vector<3x256xf32>
    %c0_23 = arith.constant 0 : index
    %c0_24 = arith.constant 0 : index
    %130 = vector.load %arg9[%c0_23, %c0_24] : memref<3x256xf32, #tpu.memory_space<vmem>>, vector<3x256xf32>
    tpu.vector_store %arg9[%c0_23, %c0_24], %129 {strides = array<i32>} : memref<3x256xf32, #tpu.memory_space<vmem>>, vector<3x256xf32>,
    return
  }
  func.func @transform_0(%arg0: i32) -> (i32, i32) {
    %c0_i32 = arith.constant 0 : i32
    %c0_i32_0 = arith.constant 0 : i32
    return %c0_i32, %arg0 : i32, i32
  }
  func.func @transform_1(%arg0: i32) -> (i32, i32) {
    %c0_i32 = arith.constant 0 : i32
    %c0_i32_0 = arith.constant 0 : i32
    %c0_i32_1 = arith.constant 0 : i32
    return %c0_i32, %c0_i32_0 : i32, i32
  }
  func.func @transform_2(%arg0: i32) -> (i32, i32) {
    %c0_i32 = arith.constant 0 : i32
    %c0_i32_0 = arith.constant 0 : i32
    %c0_i32_1 = arith.constant 0 : i32
    return %c0_i32, %c0_i32_0 : i32, i32
  }
  func.func @transform_3(%arg0: i32) -> (i32, i32) {
    %c0_i32 = arith.constant 0 : i32
    %c0_i32_0 = arith.constant 0 : i32
    %c0_i32_1 = arith.constant 0 : i32
    return %c0_i32, %c0_i32_0 : i32, i32
  }
  func.func @transform_4(%arg0: i32) -> (i32, i32) {
    %c0_i32 = arith.constant 0 : i32
    %c0_i32_0 = arith.constant 0 : i32
    %c0_i32_1 = arith.constant 0 : i32
    return %c0_i32, %c0_i32_0 : i32, i32
  }
  func.func @transform_5(%arg0: i32) -> (i32, i32) {
    %c0_i32 = arith.constant 0 : i32
    %c0_i32_0 = arith.constant 0 : i32
    %c0_i32_1 = arith.constant 0 : i32
    return %c0_i32, %c0_i32_0 : i32, i32
  }
  func.func @transform_6(%arg0: i32) -> (i32, i32) {
    %c0_i32 = arith.constant 0 : i32
    %c0_i32_0 = arith.constant 0 : i32
    %c0_i32_1 = arith.constant 0 : i32
    return %c0_i32, %c0_i32_0 : i32, i32
  }
  func.func @transform_7(%arg0: i32) -> (i32, i32) {
    %c0_i32 = arith.constant 0 : i32
    %c0_i32_0 = arith.constant 0 : i32
    %c0_i32_1 = arith.constant 0 : i32
    return %c0_i32, %c0_i32_0 : i32, i32
  }
  func.func @transform_8(%arg0: i32) -> (i32, i32) {
    %c0_i32 = arith.constant 0 : i32
    %c0_i32_0 = arith.constant 0 : i32
    return %c0_i32, %arg0 : i32, i32
  }
}

</mosaic_0001>

<llo_original>
// kernel: tpu_custom_call.1
$region0: #{tpu_custom_call.1}
  #allocation0 [shape = 'u32[]', space=smem, size = 0x4, offset = 0x4, fixed_abs, tag = 'smem constant byte address 0x4 - core index']
  #allocation1 [shape = 'u32[144,128]{1,0:T(1,128)}', space=vmem, size = 0x12000, scoped, tag = 'internal scratch']
  %s0 = inlined_call_operand.hbm [shape: f32[4,512], index: 0, kind: input, shape index: {}]
  %s1 = inlined_call_operand.hbm [shape: f32[9,256], index: 1, kind: input, shape index: {}]
  %s2 = inlined_call_operand.vmem [shape: f32[4,9], index: 2, kind: input, shape index: {}]
  %s3 = inlined_call_operand.vmem [shape: f32[4,1], index: 3, kind: input, shape index: {}]
  %s4 = inlined_call_operand.vmem [shape: f32[4,4], index: 4, kind: input, shape index: {}]
  %s5 = inlined_call_operand.vmem [shape: f32[4,1], index: 5, kind: input, shape index: {}]
  %s6 = inlined_call_operand.vmem [shape: f32[3,4], index: 6, kind: input, shape index: {}]
  %s7 = inlined_call_operand.vmem [shape: f32[3,1], index: 7, kind: input, shape index: {}]
  %s8 = inlined_call_operand.hbm [shape: f32[3,512], index: 8, kind: output, shape index: {}]
  %s9 = sld [smem:[#allocation0]]
  $region73: #{tpu_custom_call.1} parent=0
    _
  %s11 = ssub.s32 1, %s9
  %s12 = scalar_select 0, %s11, %s9
  $region1: #{tpu_custom_call.1} parent=0
    #allocation2 [shape = 'u8[8192]{0}', space=vmem, size = 0x2000, scoped, tag = 'input window, operand 0']
    #allocation3 [shape = 's32[2]{0}', space=sflag, size = 0x8, scoped, tag = 'scoped memory for tpu_custom_call.1']
    #allocation4 [shape = 's32[2]{0}', space=sflag, size = 0x8, scoped, tag = 'scoped memory for tpu_custom_call.1']
    #allocation5 [shape = 'u8[16384]{0}', space=vmem, size = 0x4000, scoped, tag = 'input window, operand 1, single buffered']
    #allocation6 [shape = 's32[1]{0}', space=sflag, size = 0x4, scoped, tag = 'scoped memory for tpu_custom_call.1']
    #allocation7 [shape = 'u8[8192]{0}', space=vmem, size = 0x2000, scoped, tag = 'output window, operand 0']
    %13 = vsyncpa [#allocation3], 0
    %s14 = scalar_lea.sflag [#allocation3], 1
    %15 = vsyncpa %s14, 0
    %16 = vsyncpa [#allocation6], 0
    %17 = vsyncpa [#allocation4], 0
    %s18 = scalar_lea.sflag [#allocation4], 1
    %19 = vsyncpa %s18, 0
    loop: start=0, step=1, limit=4
    $region2: #{tpu_custom_call.1} parent=1 // loop_pre_header
      _
    $region3: #{tpu_custom_call.1} parent=1 // loop_header
      %s21 = sphi 0, %s25
      %p22 = scmp.ge.s32.totalorder %s21, 4
      %s31 = sphi 0, %s33
      %s34 = sphi 0, %s31
      %s35 = sphi 0, %s34
      %s51 = sphi 0, %s35
      %s55 = sphi 0, %s55
      %s57 = sphi 0, %s55
      %s58 = sphi 0, %s57
      %s72 = sphi 0, %s58
      %s76 = sphi 0, %s76
      %s78 = sphi 0, %s76
      %s79 = sphi 0, %s78
      %s93 = sphi 0, %s79
      %s97 = sphi 0, %s97
      %s99 = sphi 0, %s97
      %s100 = sphi 0, %s99
      %s114 = sphi 0, %s100
      %s118 = sphi 0, %s118
      %s120 = sphi 0, %s118
      %s121 = sphi 0, %s120
      %s135 = sphi 0, %s121
      %s139 = sphi 0, %s139
      %s141 = sphi 0, %s139
      %s142 = sphi 0, %s141
      %s156 = sphi 0, %s142
      %s160 = sphi 0, %s160
      %s162 = sphi 0, %s160
      %s163 = sphi 0, %s162
      %s177 = sphi 0, %s163
      %s181 = sphi 0, %s181
      %s183 = sphi 0, %s181
      %s184 = sphi 0, %s183
      %s198 = sphi 0, %s184
      %s204 = sphi 0, %s206
      %s207 = sphi 0, %s204
      %s208 = sphi 0, %s207
      %s224 = sphi 0, %s208
    $region4: #{tpu_custom_call.1} parent=1 // loop_header_branch
      %24 = sbr.rel (%p22) target = $region8
    $region5: #{tpu_custom_call.1} parent=1 // loop_body
      %s26 = ssub.s32 %s21, 1
      %s27 = ssub.s32 %s21, 2
      %s28 = sadd.s32 %s21, 1
      %s29 = ssub.s32 %s21, %s28
      %p30 = scmp.eq.s32.totalorder %s29, 0
      %s32 = sadd.s32 %s31, 1
      %s33 = scalar_select %p30, %s31, %s32
      %p36 = pneg %p30
      %p37 = scmp.eq.s32.totalorder %s21, 1
      %p38 = por %p36, %p37
      %p39 = scmp.ne.s32.totalorder %s31, %s34
      %p40 = scmp.eq.s32.totalorder %s21, 0
      %p41 = por %p39, %p40
      %p42 = scmp.ne.s32.totalorder %s31, %s34
      %p43 = scmp.eq.s32.totalorder %s26, 1
      %p44 = por %p42, %p43
      %p45 = scmp.ne.s32.totalorder %s34, %s35
      %p46 = scmp.eq.s32.totalorder %s26, 0
      %p47 = por %p45, %p46
      %p48 = scmp.ne.s32.totalorder %s34, %s35
      %p49 = scmp.eq.s32.totalorder %s27, 1
      %p50 = por %p48, %p49
      %p52 = scmp.ne.s32.totalorder %s35, %s51
      %p53 = scmp.eq.s32.totalorder %s27, 0
      %p54 = por %p52, %p53
      %s56 = sadd.s32 %s55, 1
      %p59 = scmp.eq.s32.totalorder %s21, 1
      %p60 = scmp.ne.s32.totalorder %s55, %s57
      %p61 = scmp.eq.s32.totalorder %s21, 0
      %p62 = por %p60, %p61
      %p63 = scmp.ne.s32.totalorder %s55, %s57
      %p64 = scmp.eq.s32.totalorder %s26, 1
      %p65 = por %p63, %p64
      %p66 = scmp.ne.s32.totalorder %s57, %s58
      %p67 = scmp.eq.s32.totalorder %s26, 0
      %p68 = por %p66, %p67
      %p69 = scmp.ne.s32.totalorder %s57, %s58
      %p70 = scmp.eq.s32.totalorder %s27, 1
      %p71 = por %p69, %p70
      %p73 = scmp.ne.s32.totalorder %s58, %s72
      %p74 = scmp.eq.s32.totalorder %s27, 0
      %p75 = por %p73, %p74
      %s77 = sadd.s32 %s76, 1
      %p80 = scmp.eq.s32.totalorder %s21, 1
      %p81 = scmp.ne.s32.totalorder %s76, %s78
      %p82 = scmp.eq.s32.totalorder %s21, 0
      %p83 = por %p81, %p82
      %p84 = scmp.ne.s32.totalorder %s76, %s78
      %p85 = scmp.eq.s32.totalorder %s26, 1
      %p86 = por %p84, %p85
      %p87 = scmp.ne.s32.totalorder %s78, %s79
      %p88 = scmp.eq.s32.totalorder %s26, 0
      %p89 = por %p87, %p88
      %p90 = scmp.ne.s32.totalorder %s78, %s79
      %p91 = scmp.eq.s32.totalorder %s27, 1
      %p92 = por %p90, %p91
      %p94 = scmp.ne.s32.totalorder %s79, %s93
      %p95 = scmp.eq.s32.totalorder %s27, 0
      %p96 = por %p94, %p95
      %s98 = sadd.s32 %s97, 1
      %p101 = scmp.eq.s32.totalorder %s21, 1
      %p102 = scmp.ne.s32.totalorder %s97, %s99
      %p103 = scmp.eq.s32.totalorder %s21, 0
      %p104 = por %p102, %p103
      %p105 = scmp.ne.s32.totalorder %s97, %s99
      %p106 = scmp.eq.s32.totalorder %s26, 1
      %p107 = por %p105, %p106
      %p108 = scmp.ne.s32.totalorder %s99, %s100
      %p109 = scmp.eq.s32.totalorder %s26, 0
      %p110 = por %p108, %p109
      %p111 = scmp.ne.s32.totalorder %s99, %s100
      %p112 = scmp.eq.s32.totalorder %s27, 1
      %p113 = por %p111, %p112
      %p115 = scmp.ne.s32.totalorder %s100, %s114
      %p116 = scmp.eq.s32.totalorder %s27, 0
      %p117 = por %p115, %p116
      %s119 = sadd.s32 %s118, 1
      %p122 = scmp.eq.s32.totalorder %s21, 1
      %p123 = scmp.ne.s32.totalorder %s118, %s120
      %p124 = scmp.eq.s32.totalorder %s21, 0
      %p125 = por %p123, %p124
      %p126 = scmp.ne.s32.totalorder %s118, %s120
      %p127 = scmp.eq.s32.totalorder %s26, 1
      %p128 = por %p126, %p127
      %p129 = scmp.ne.s32.totalorder %s120, %s121
      %p130 = scmp.eq.s32.totalorder %s26, 0
      %p131 = por %p129, %p130
      %p132 = scmp.ne.s32.totalorder %s120, %s121
      %p133 = scmp.eq.s32.totalorder %s27, 1
      %p134 = por %p132, %p133
      %p136 = scmp.ne.s32.totalorder %s121, %s135
      %p137 = scmp.eq.s32.totalorder %s27, 0
      %p138 = por %p136, %p137
      %s140 = sadd.s32 %s139, 1
      %p143 = scmp.eq.s32.totalorder %s21, 1
      %p144 = scmp.ne.s32.totalorder %s139, %s141
      %p145 = scmp.eq.s32.totalorder %s21, 0
      %p146 = por %p144, %p145
      %p147 = scmp.ne.s32.totalorder %s139, %s141
      %p148 = scmp.eq.s32.totalorder %s26, 1
      %p149 = por %p147, %p148
      %p150 = scmp.ne.s32.totalorder %s141, %s142
      %p151 = scmp.eq.s32.totalorder %s26, 0
      %p152 = por %p150, %p151
      %p153 = scmp.ne.s32.totalorder %s141, %s142
      %p154 = scmp.eq.s32.totalorder %s27, 1
      %p155 = por %p153, %p154
      %p157 = scmp.ne.s32.totalorder %s142, %s156
      %p158 = scmp.eq.s32.totalorder %s27, 0
      %p159 = por %p157, %p158
      %s161 = sadd.s32 %s160, 1
      %p164 = scmp.eq.s32.totalorder %s21, 1
      %p165 = scmp.ne.s32.totalorder %s160, %s162
      %p166 = scmp.eq.s32.totalorder %s21, 0
      %p167 = por %p165, %p166
      %p168 = scmp.ne.s32.totalorder %s160, %s162
      %p169 = scmp.eq.s32.totalorder %s26, 1
      %p170 = por %p168, %p169
      %p171 = scmp.ne.s32.totalorder %s162, %s163
      %p172 = scmp.eq.s32.totalorder %s26, 0
      %p173 = por %p171, %p172
      %p174 = scmp.ne.s32.totalorder %s162, %s163
      %p175 = scmp.eq.s32.totalorder %s27, 1
      %p176 = por %p174, %p175
      %p178 = scmp.ne.s32.totalorder %s163, %s177
      %p179 = scmp.eq.s32.totalorder %s27, 0
      %p180 = por %p178, %p179
      %s182 = sadd.s32 %s181, 1
      %p185 = scmp.eq.s32.totalorder %s21, 1
      %p186 = scmp.ne.s32.totalorder %s181, %s183
      %p187 = scmp.eq.s32.totalorder %s21, 0
      %p188 = por %p186, %p187
      %p189 = scmp.ne.s32.totalorder %s181, %s183
      %p190 = scmp.eq.s32.totalorder %s26, 1
      %p191 = por %p189, %p190
      %p192 = scmp.ne.s32.totalorder %s183, %s184
      %p193 = scmp.eq.s32.totalorder %s26, 0
      %p194 = por %p192, %p193
      %p195 = scmp.ne.s32.totalorder %s183, %s184
      %p196 = scmp.eq.s32.totalorder %s27, 1
      %p197 = por %p195, %p196
      %p199 = scmp.ne.s32.totalorder %s184, %s198
      %p200 = scmp.eq.s32.totalorder %s27, 0
      %p201 = por %p199, %p200
      %s202 = ssub.s32 %s21, %s28
      %p203 = scmp.eq.s32.totalorder %s202, 0
      %s205 = sadd.s32 %s204, 1
      %s206 = scalar_select %p203, %s204, %s205
      %p209 = pneg %p203
      %p210 = scmp.eq.s32.totalorder %s21, 1
      %p211 = por %p209, %p210
      %p212 = scmp.ne.s32.totalorder %s204, %s207
      %p213 = scmp.eq.s32.totalorder %s21, 0
      %p214 = por %p212, %p213
      %p215 = scmp.ne.s32.totalorder %s204, %s207
      %p216 = scmp.eq.s32.totalorder %s26, 1
      %p217 = por %p215, %p216
      %p218 = scmp.ne.s32.totalorder %s207, %s208
      %p219 = scmp.eq.s32.totalorder %s26, 0
      %p220 = por %p218, %p219
      %p221 = scmp.ne.s32.totalorder %s207, %s208
      %p222 = scmp.eq.s32.totalorder %s27, 1
      %p223 = por %p221, %p222
      %p225 = scmp.ne.s32.totalorder %s208, %s224
      %p226 = scmp.eq.s32.totalorder %s27, 0
      %p227 = por %p225, %p226
      %p228 = scmp.le.s32.totalorder 1, %s21
      %p229 = scmp.lt.s32.totalorder %s21, 3
      %p230 = pnand %p228, %p229
      %p231 = pneg %p230
      // Predicated region
      $region9: #{tpu_custom_call.1} parent=5 // pred_check
        _
      $region10: #{tpu_custom_call.1} parent=5 // pred_check_branch
        %233 = sbr.rel (%p230) target = $region12
      $region11: #{tpu_custom_call.1} parent=5 // pred_region
        %s234 = ssub.s32 %s21, 1
        // Predicated region
        $region13: #{tpu_custom_call.1} parent=11 // pred_check
          %p235 = pneg %p68
        $region14: #{tpu_custom_call.1} parent=11 // pred_check_branch
          %237 = sbr.rel (%p235) target = $region16
        $region15: #{tpu_custom_call.1} parent=11 // pred_region
          %s239 = ssub.s32 512, 512
          %240 = vsyncadd [#allocation6], %s239
          %s241 = sshll.u32 [#allocation5], 4
          %s242 = int_to_ptr.vmem [resolvable:$true] %s241
          %247 = dma.hbm_to_vmem [thread:$0]  %s1, 512, %s242, [#allocation6], 256, 256, 16
        $region16: #{tpu_custom_call.1} parent=11 // pred_fallthru
          _
        // Predicated region
        $region17: #{tpu_custom_call.1} parent=11 // pred_check
          %p248 = pneg %p89
        $region18: #{tpu_custom_call.1} parent=11 // pred_check_branch
          %250 = sbr.rel (%p248) target = $region20
        $region19: #{tpu_custom_call.1} parent=11 // pred_region
          _
        $region20: #{tpu_custom_call.1} parent=11 // pred_fallthru
          _
        // Predicated region
        $region21: #{tpu_custom_call.1} parent=11 // pred_check
          %p251 = pneg %p110
        $region22: #{tpu_custom_call.1} parent=11 // pred_check_branch
          %253 = sbr.rel (%p251) target = $region24
        $region23: #{tpu_custom_call.1} parent=11 // pred_region
          _
        $region24: #{tpu_custom_call.1} parent=11 // pred_fallthru
          _
        // Predicated region
        $region25: #{tpu_custom_call.1} parent=11 // pred_check
          %p254 = pneg %p131
        $region26: #{tpu_custom_call.1} parent=11 // pred_check_branch
          %256 = sbr.rel (%p254) target = $region28
        $region27: #{tpu_custom_call.1} parent=11 // pred_region
          _
        $region28: #{tpu_custom_call.1} parent=11 // pred_fallthru
          _
        // Predicated region
        $region29: #{tpu_custom_call.1} parent=11 // pred_check
          %p257 = pneg %p152
        $region30: #{tpu_custom_call.1} parent=11 // pred_check_branch
          %259 = sbr.rel (%p257) target = $region32
        $region31: #{tpu_custom_call.1} parent=11 // pred_region
          _
        $region32: #{tpu_custom_call.1} parent=11 // pred_fallthru
          _
        // Predicated region
        $region33: #{tpu_custom_call.1} parent=11 // pred_check
          %p260 = pneg %p173
        $region34: #{tpu_custom_call.1} parent=11 // pred_check_branch
          %262 = sbr.rel (%p260) target = $region36
        $region35: #{tpu_custom_call.1} parent=11 // pred_region
          _
        $region36: #{tpu_custom_call.1} parent=11 // pred_fallthru
          _
        // Predicated region
        $region37: #{tpu_custom_call.1} parent=11 // pred_check
          %p263 = pneg %p194
        $region38: #{tpu_custom_call.1} parent=11 // pred_check_branch
          %265 = sbr.rel (%p263) target = $region40
        $region39: #{tpu_custom_call.1} parent=11 // pred_region
          _
        $region40: #{tpu_custom_call.1} parent=11 // pred_fallthru
          _
      $region12: #{tpu_custom_call.1} parent=5 // pred_fallthru
        _
      %p266 = scmp.lt.s32.totalorder %s21, 2
      // Predicated region
      $region41: #{tpu_custom_call.1} parent=5 // pred_check
        %p267 = pneg %p266
      $region42: #{tpu_custom_call.1} parent=5 // pred_check_branch
        %269 = sbr.rel (%p267) target = $region44
      $region43: #{tpu_custom_call.1} parent=5 // pred_region
        // Predicated region
        $region45: #{tpu_custom_call.1} parent=43 // pred_check
          %p270 = pneg %p41
        $region46: #{tpu_custom_call.1} parent=43 // pred_check_branch
          %272 = sbr.rel (%p270) target = $region48
        $region47: #{tpu_custom_call.1} parent=43 // pred_region
          %s273 = sand.u32 %s31, 1
          %s274 = scalar_lea.sflag [#allocation3], %s273
          %s275 = sand.u32 %s31, 1
          %s276 = smul.addr %s275, 8
          %s277 = scalar_lea.vmem [#allocation2], %s276
          %s278 = smul.u32 2, %s21
          %s280 = ssub.s32 128, 128
          %281 = vsyncadd %s274, %s280
          %s282 = smul.addr %s278, 64
          %s283 = scalar_lea.hbm %s0, %s282
          %s285 = sshll.u32 %s277, 4
          %s286 = int_to_ptr.vmem [resolvable:$true] %s285
          %288 = dma.hbm_to_vmem [thread:$0]  %s283, 128, %s286, %s274
        $region48: #{tpu_custom_call.1} parent=43 // pred_fallthru
          _
      $region44: #{tpu_custom_call.1} parent=5 // pred_fallthru
        _
      %p289 = scmp.le.s32.totalorder 1, %s21
      %p290 = scmp.lt.s32.totalorder %s21, 3
      %p291 = pnand %p289, %p290
      %p292 = pneg %p291
      // Predicated region
      $region49: #{tpu_custom_call.1} parent=5 // pred_check
        _
      $region50: #{tpu_custom_call.1} parent=5 // pred_check_branch
        %294 = sbr.rel (%p291) target = $region52
      $region51: #{tpu_custom_call.1} parent=5 // pred_region
        %s295 = ssub.s32 %s21, 1
        %s296 = sand.u32 %s34, 1
        %s297 = scalar_lea.sflag [#allocation3], %s296
        %s298 = sand.u32 %s34, 1
        %s299 = smul.addr %s298, 8
        %s300 = scalar_lea.vmem [#allocation2], %s299
        // Predicated region
        $region53: #{tpu_custom_call.1} parent=51 // pred_check
          %p301 = pneg %p47
        $region54: #{tpu_custom_call.1} parent=51 // pred_check_branch
          %303 = sbr.rel (%p301) target = $region56
        $region55: #{tpu_custom_call.1} parent=51 // pred_region
          %304 = dma.done %s297, 128
        $region56: #{tpu_custom_call.1} parent=51 // pred_fallthru
          _
        // Predicated region
        $region57: #{tpu_custom_call.1} parent=51 // pred_check
          %p305 = pneg %p68
        $region58: #{tpu_custom_call.1} parent=51 // pred_check_branch
          %307 = sbr.rel (%p305) target = $region60
        $region59: #{tpu_custom_call.1} parent=51 // pred_region
          %308 = dma.done [#allocation6], 512
        $region60: #{tpu_custom_call.1} parent=51 // pred_fallthru
          _
        %s309 = sand.u32 %s34, 1
        %s310 = scalar_lea.sflag [#allocation3], %s309
        %s311 = sand.u32 %s34, 1
        %s312 = smul.addr %s311, 8
        %s313 = scalar_lea.vmem [#allocation2], %s312
        %p314 = pneg %p47
        %p315 = pneg %p44
        %p316 = pneg %p68
        %p317 = pneg %p65
        %p318 = pneg %p89
        %p319 = pneg %p86
        %p320 = pneg %p110
        %p321 = pneg %p107
        %p322 = pneg %p131
        %p323 = pneg %p128
        %p324 = pneg %p152
        %p325 = pneg %p149
        %p326 = pneg %p173
        %p327 = pneg %p170
        %p328 = pneg %p194
        %p329 = pneg %p191
        %p330 = pneg %p220
        %p331 = pneg %p217
        %s332 = sand.u32 %s207, 1
        %s333 = scalar_lea.sflag [#allocation4], %s332
        %s334 = sand.u32 %s207, 1
        %s335 = smul.addr %s334, 8
        %s336 = scalar_lea.vmem [#allocation7], %s335
        %s337 = smul.u32 2, %s26
        %s338 = smul.u32 2, %s26
        %v339 = vld [vmem:[%s300] sm:$0xff]
        %v340 = vld [vmem:[%s2] sm:$0xf]
        %342 = vset.pattern.permute.xlu0 4
        %343 = vperm.xlu0 %342, %v340
        %v344 = vpop.permute.xlu0 %343
        %v346 = vunpack.c.l.s4 839922192
        %v347 = vunpack.c.0.s8 %v346
        %v348 = vlaneseq
        %v349 = vshrl.u32 %v348, 7
        %v350 = vsub.s32 %v347, %v349
        %v351 = vrot.slane %v344, %v350
        %v353 = vmul.f32 %v339, %v351
        %v355 = vcombine.high %v339, %v339
        %357 = vrot.lane.b32.xlu0 %v339, 17
        %v358 = vpop.permute.xlu0 %357
        %359 = vrot.lane.b32.xlu0 %v355, 17
        %v360 = vpop.permute.xlu0 %359
        %v361 = vlaneseq
        %v362 = vand.u32 %v361, 127
        %vm363 = vcmp.lt.s32.totalorder %v362, 17
        %v364 = vsel %vm363, %v358, %v360
        %v365 = vsel %vm363, %v360, %v358
        %v366 = vld [vmem:[#allocation5] ss:$8 sm:$0x3]
        %v368 = vlaneseq
        %v369 = vshrl.u32 %v368, 7
        %v370 = vsub.s32 0, %v369
        %v371 = vrot.slane %v366, %v370
        %v372 = vlaneseq
        %v373 = vshrl.u32 %v372, 7
        %v374 = vsub.s32 1, %v373
        %v375 = vrot.slane %v366, %v374
        %v378 = vmul.f32 %v365, %v371
        %v379 = vmul.f32 %v364, %v375
        %380 = vset.pattern.permute.xlu0 0
        %381 = vperm.xlu0 %380, %v340
        %v382 = vpop.permute.xlu0 %381
        %v384 = vmul.f32 %v378, %v382
        %v385 = vmul.f32 %v379, %v382
        %v388 = vcombine.low %v384, %v385
        %v390 = vadd.f32 %v353, %v388
        %391 = vrot.lane.b32.xlu0 %v339, 16
        %v392 = vpop.permute.xlu0 %391
        %393 = vrot.lane.b32.xlu0 %v355, 16
        %v394 = vpop.permute.xlu0 %393
        %vm395 = vcmp.lt.s32.totalorder %v362, 16
        %v396 = vsel %vm395, %v392, %v394
        %v397 = vsel %vm395, %v394, %v392
        %s398 = scalar_lea.vmem [#allocation5], 1
        %v399 = vld [vmem:[%s398] ss:$8 sm:$0x3]
        %v401 = vlaneseq
        %v402 = vshrl.u32 %v401, 7
        %v403 = vsub.s32 0, %v402
        %v404 = vrot.slane %v399, %v403
        %v405 = vlaneseq
        %v406 = vshrl.u32 %v405, 7
        %v407 = vsub.s32 1, %v406
        %v408 = vrot.slane %v399, %v407
        %v411 = vmul.f32 %v397, %v404
        %v412 = vmul.f32 %v396, %v408
        %413 = vset.pattern.permute.xlu0 1
        %414 = vperm.xlu0 %413, %v340
        %v415 = vpop.permute.xlu0 %414
        %v417 = vmul.f32 %v411, %v415
        %v418 = vmul.f32 %v412, %v415
        %v421 = vcombine.low %v417, %v418
        %v423 = vadd.f32 %v390, %v421
        %424 = vrot.lane.b32.xlu0 %v339, 15
        %v425 = vpop.permute.xlu0 %424
        %426 = vrot.lane.b32.xlu0 %v355, 15
        %v427 = vpop.permute.xlu0 %426
        %vm428 = vcmp.lt.s32.totalorder %v362, 15
        %v429 = vsel %vm428, %v425, %v427
        %v430 = vsel %vm428, %v427, %v425
        %s431 = scalar_lea.vmem [#allocation5], 2
        %v432 = vld [vmem:[%s431] ss:$8 sm:$0x3]
        %v434 = vlaneseq
        %v435 = vshrl.u32 %v434, 7
        %v436 = vsub.s32 0, %v435
        %v437 = vrot.slane %v432, %v436
        %v438 = vlaneseq
        %v439 = vshrl.u32 %v438, 7
        %v440 = vsub.s32 1, %v439
        %v441 = vrot.slane %v432, %v440
        %v444 = vmul.f32 %v430, %v437
        %v445 = vmul.f32 %v429, %v441
        %446 = vset.pattern.permute.xlu0 2
        %447 = vperm.xlu0 %446, %v340
        %v448 = vpop.permute.xlu0 %447
        %v450 = vmul.f32 %v444, %v448
        %v451 = vmul.f32 %v445, %v448
        %v454 = vcombine.low %v450, %v451
        %v456 = vadd.f32 %v423, %v454
        %457 = vrot.lane.b32.xlu0 %v339, 1
        %v458 = vpop.permute.xlu0 %457
        %459 = vrot.lane.b32.xlu0 %v355, 1
        %v460 = vpop.permute.xlu0 %459
        %vm461 = vcmp.lt.s32.totalorder %v362, 1
        %v462 = vsel %vm461, %v458, %v460
        %v463 = vsel %vm461, %v460, %v458
        %s464 = scalar_lea.vmem [#allocation5], 3
        %v465 = vld [vmem:[%s464] ss:$8 sm:$0x3]
        %v467 = vlaneseq
        %v468 = vshrl.u32 %v467, 7
        %v469 = vsub.s32 0, %v468
        %v470 = vrot.slane %v465, %v469
        %v471 = vlaneseq
        %v472 = vshrl.u32 %v471, 7
        %v473 = vsub.s32 1, %v472
        %v474 = vrot.slane %v465, %v473
        %v477 = vmul.f32 %v463, %v470
        %v478 = vmul.f32 %v462, %v474
        %479 = vset.pattern.permute.xlu0 3
        %480 = vperm.xlu0 %479, %v340
        %v481 = vpop.permute.xlu0 %480
        %v483 = vmul.f32 %v477, %v481
        %v484 = vmul.f32 %v478, %v481
        %v487 = vcombine.low %v483, %v484
        %v489 = vadd.f32 %v456, %v487
        %490 = vrot.lane.b32.xlu0 %v339, 127
        %v491 = vpop.permute.xlu0 %490
        %492 = vrot.lane.b32.xlu0 %v355, 127
        %v493 = vpop.permute.xlu0 %492
        %vm494 = vcmp.lt.s32.totalorder %v362, 127
        %v495 = vsel %vm494, %v491, %v493
        %v496 = vsel %vm494, %v493, %v491
        %s497 = scalar_lea.vmem [#allocation5], 5
        %v498 = vld [vmem:[%s497] ss:$8 sm:$0x3]
        %v500 = vlaneseq
        %v501 = vshrl.u32 %v500, 7
        %v502 = vsub.s32 0, %v501
        %v503 = vrot.slane %v498, %v502
        %v504 = vlaneseq
        %v505 = vshrl.u32 %v504, 7
        %v506 = vsub.s32 1, %v505
        %v507 = vrot.slane %v498, %v506
        %v510 = vmul.f32 %v495, %v503
        %v511 = vmul.f32 %v496, %v507
        %512 = vset.pattern.permute.xlu0 5
        %513 = vperm.xlu0 %512, %v340
        %v514 = vpop.permute.xlu0 %513
        %v516 = vmul.f32 %v510, %v514
        %v517 = vmul.f32 %v511, %v514
        %v520 = vcombine.low %v516, %v517
        %v522 = vadd.f32 %v489, %v520
        %523 = vrot.lane.b32.xlu0 %v339, 113
        %v524 = vpop.permute.xlu0 %523
        %525 = vrot.lane.b32.xlu0 %v355, 113
        %v526 = vpop.permute.xlu0 %525
        %vm527 = vcmp.lt.s32.totalorder %v362, 113
        %v528 = vsel %vm527, %v524, %v526
        %v529 = vsel %vm527, %v526, %v524
        %s530 = scalar_lea.vmem [#allocation5], 6
        %v531 = vld [vmem:[%s530] ss:$8 sm:$0x3]
        %v533 = vlaneseq
        %v534 = vshrl.u32 %v533, 7
        %v535 = vsub.s32 0, %v534
        %v536 = vrot.slane %v531, %v535
        %v537 = vlaneseq
        %v538 = vshrl.u32 %v537, 7
        %v539 = vsub.s32 1, %v538
        %v540 = vrot.slane %v531, %v539
        %v543 = vmul.f32 %v528, %v536
        %v544 = vmul.f32 %v529, %v540
        %545 = vset.pattern.permute.xlu0 6
        %546 = vperm.xlu0 %545, %v340
        %v547 = vpop.permute.xlu0 %546
        %v549 = vmul.f32 %v543, %v547
        %v550 = vmul.f32 %v544, %v547
        %v553 = vcombine.low %v549, %v550
        %v555 = vadd.f32 %v522, %v553
        %556 = vrot.lane.b32.xlu0 %v339, 112
        %v557 = vpop.permute.xlu0 %556
        %558 = vrot.lane.b32.xlu0 %v355, 112
        %v559 = vpop.permute.xlu0 %558
        %vm560 = vcmp.lt.s32.totalorder %v362, 112
        %v561 = vsel %vm560, %v557, %v559
        %v562 = vsel %vm560, %v559, %v557
        %s563 = scalar_lea.vmem [#allocation5], 7
        %v564 = vld [vmem:[%s563] ss:$8 sm:$0x3]
        %v566 = vlaneseq
        %v567 = vshrl.u32 %v566, 7
        %v568 = vsub.s32 0, %v567
        %v569 = vrot.slane %v564, %v568
        %v570 = vlaneseq
        %v571 = vshrl.u32 %v570, 7
        %v572 = vsub.s32 1, %v571
        %v573 = vrot.slane %v564, %v572
        %v576 = vmul.f32 %v561, %v569
        %v577 = vmul.f32 %v562, %v573
        %578 = vset.pattern.permute.xlu0 7
        %579 = vperm.xlu0 %578, %v340
        %v580 = vpop.permute.xlu0 %579
        %v582 = vmul.f32 %v576, %v580
        %v583 = vmul.f32 %v577, %v580
        %v586 = vcombine.low %v582, %v583
        %v588 = vadd.f32 %v555, %v586
        %589 = vrot.lane.b32.xlu0 %v339, 111
        %v590 = vpop.permute.xlu0 %589
        %591 = vrot.lane.b32.xlu0 %v355, 111
        %v592 = vpop.permute.xlu0 %591
        %vm593 = vcmp.lt.s32.totalorder %v362, 111
        %v594 = vsel %vm593, %v590, %v592
        %v595 = vsel %vm593, %v592, %v590
        %s596 = scalar_lea.vmem [#allocation5], 16
        %v597 = vld [vmem:[%s596] ss:$8 sm:$0x3]
        %v599 = vlaneseq
        %v600 = vshrl.u32 %v599, 7
        %v601 = vsub.s32 0, %v600
        %v602 = vrot.slane %v597, %v601
        %v603 = vlaneseq
        %v604 = vshrl.u32 %v603, 7
        %v605 = vsub.s32 1, %v604
        %v606 = vrot.slane %v597, %v605
        %v609 = vmul.f32 %v594, %v602
        %v610 = vmul.f32 %v595, %v606
        %611 = vset.pattern.permute.xlu0 8
        %612 = vperm.xlu0 %611, %v340
        %v613 = vpop.permute.xlu0 %612
        %v615 = vmul.f32 %v609, %v613
        %v616 = vmul.f32 %v610, %v613
        %v619 = vcombine.low %v615, %v616
        %v621 = vadd.f32 %v588, %v619
        %v622 = vld [vmem:[%s3] sm:$0xf]
        %624 = vset.pattern.permute.xlu0 0
        %625 = vperm.xlu0 %624, %v622
        %v626 = vpop.permute.xlu0 %625
        %v628 = vunpack.c.l.s4 839922192
        %v629 = vunpack.c.0.s8 %v628
        %v630 = vlaneseq
        %v631 = vshrl.u32 %v630, 7
        %v632 = vsub.s32 %v629, %v631
        %v633 = vrot.slane %v626, %v632
        %v635 = vadd.f32 %v621, %v633
        %v636 = vmax.f32 %v635, 0.0
        %v637 = vld [vmem:[%s4] sm:$0xf]
        %639 = vset.pattern.permute.xlu0 0
        %640 = vperm.xlu0 %639, %v637
        %v641 = vpop.permute.xlu0 %640
        %v644 = vlaneseq
        %v645 = vshrl.u32 %v644, 7
        %v646 = vsub.s32 0, %v645
        %v647 = vrot.slane %v636, %v646
        %v648 = vlaneseq
        %v649 = vshrl.u32 %v648, 7
        %v650 = vsub.s32 4, %v649
        %v651 = vrot.slane %v636, %v650
        %v654 = vlaneseq
        %v655 = vshrl.u32 %v654, 7
        %v656 = vsub.s32 0, %v655
        %v657 = vrot.slane %v647, %v656
        %v658 = vlaneseq
        %v659 = vshrl.u32 %v658, 7
        %v660 = vsub.s32 0, %v659
        %v661 = vrot.slane %v651, %v660
        %v662 = vmul.f32 %v641, %v657
        %v663 = vmul.f32 %v641, %v661
        %664 = vset.pattern.permute.xlu0 1
        %665 = vperm.xlu0 %664, %v637
        %v666 = vpop.permute.xlu0 %665
        %v668 = vlaneseq
        %v669 = vshrl.u32 %v668, 7
        %v670 = vsub.s32 1, %v669
        %v671 = vrot.slane %v636, %v670
        %v672 = vlaneseq
        %v673 = vshrl.u32 %v672, 7
        %v674 = vsub.s32 5, %v673
        %v675 = vrot.slane %v636, %v674
        %v678 = vlaneseq
        %v679 = vshrl.u32 %v678, 7
        %v680 = vsub.s32 1, %v679
        %v681 = vrot.slane %v671, %v680
        %v682 = vlaneseq
        %v683 = vshrl.u32 %v682, 7
        %v684 = vsub.s32 1, %v683
        %v685 = vrot.slane %v675, %v684
        %v686 = vmul.f32 %v666, %v681
        %v687 = vmul.f32 %v666, %v685
        %v688 = vadd.f32 %v662, %v686
        %v689 = vadd.f32 %v663, %v687
        %690 = vset.pattern.permute.xlu0 2
        %691 = vperm.xlu0 %690, %v637
        %v692 = vpop.permute.xlu0 %691
        %v694 = vlaneseq
        %v695 = vshrl.u32 %v694, 7
        %v696 = vsub.s32 2, %v695
        %v697 = vrot.slane %v636, %v696
        %v698 = vlaneseq
        %v699 = vshrl.u32 %v698, 7
        %v700 = vsub.s32 6, %v699
        %v701 = vrot.slane %v636, %v700
        %v704 = vlaneseq
        %v705 = vshrl.u32 %v704, 7
        %v706 = vsub.s32 2, %v705
        %v707 = vrot.slane %v697, %v706
        %v708 = vlaneseq
        %v709 = vshrl.u32 %v708, 7
        %v710 = vsub.s32 2, %v709
        %v711 = vrot.slane %v701, %v710
        %v712 = vmul.f32 %v692, %v707
        %v713 = vmul.f32 %v692, %v711
        %v714 = vadd.f32 %v688, %v712
        %v715 = vadd.f32 %v689, %v713
        %716 = vset.pattern.permute.xlu0 3
        %717 = vperm.xlu0 %716, %v637
        %v718 = vpop.permute.xlu0 %717
        %v720 = vlaneseq
        %v721 = vshrl.u32 %v720, 7
        %v722 = vsub.s32 3, %v721
        %v723 = vrot.slane %v636, %v722
        %v724 = vlaneseq
        %v725 = vshrl.u32 %v724, 7
        %v726 = vsub.s32 7, %v725
        %v727 = vrot.slane %v636, %v726
        %v730 = vlaneseq
        %v731 = vshrl.u32 %v730, 7
        %v732 = vsub.s32 3, %v731
        %v733 = vrot.slane %v723, %v732
        %v734 = vlaneseq
        %v735 = vshrl.u32 %v734, 7
        %v736 = vsub.s32 3, %v735
        %v737 = vrot.slane %v727, %v736
        %v738 = vmul.f32 %v718, %v733
        %v739 = vmul.f32 %v718, %v737
        %v740 = vadd.f32 %v714, %v738
        %v741 = vadd.f32 %v715, %v739
        %v742 = vld [vmem:[%s5] sm:$0xf]
        %744 = vset.pattern.permute.xlu0 0
        %745 = vperm.xlu0 %744, %v742
        %v746 = vpop.permute.xlu0 %745
        %v748 = vadd.f32 %v740, %v746
        %v749 = vadd.f32 %v741, %v746
        %v750 = vmax.f32 %v748, 0.0
        %v751 = vmax.f32 %v749, 0.0
        %v752 = vld [vmem:[%s6] sm:$0x7]
        %754 = vset.pattern.permute.xlu0 0
        %755 = vperm.xlu0 %754, %v752
        %v756 = vpop.permute.xlu0 %755
        %v758 = vlaneseq
        %v759 = vshrl.u32 %v758, 7
        %v760 = vsub.s32 0, %v759
        %v761 = vrot.slane %v750, %v760
        %v762 = vlaneseq
        %v763 = vshrl.u32 %v762, 7
        %v764 = vsub.s32 0, %v763
        %v765 = vrot.slane %v751, %v764
        %v766 = vmul.f32 %v756, %v761
        %v767 = vmul.f32 %v756, %v765
        %768 = vset.pattern.permute.xlu0 1
        %769 = vperm.xlu0 %768, %v752
        %v770 = vpop.permute.xlu0 %769
        %v772 = vlaneseq
        %v773 = vshrl.u32 %v772, 7
        %v774 = vsub.s32 1, %v773
        %v775 = vrot.slane %v750, %v774
        %v776 = vlaneseq
        %v777 = vshrl.u32 %v776, 7
        %v778 = vsub.s32 1, %v777
        %v779 = vrot.slane %v751, %v778
        %v780 = vmul.f32 %v770, %v775
        %v781 = vmul.f32 %v770, %v779
        %v782 = vadd.f32 %v766, %v780
        %v783 = vadd.f32 %v767, %v781
        %784 = vset.pattern.permute.xlu0 2
        %785 = vperm.xlu0 %784, %v752
        %v786 = vpop.permute.xlu0 %785
        %v788 = vlaneseq
        %v789 = vshrl.u32 %v788, 7
        %v790 = vsub.s32 2, %v789
        %v791 = vrot.slane %v750, %v790
        %v792 = vlaneseq
        %v793 = vshrl.u32 %v792, 7
        %v794 = vsub.s32 2, %v793
        %v795 = vrot.slane %v751, %v794
        %v796 = vmul.f32 %v786, %v791
        %v797 = vmul.f32 %v786, %v795
        %v798 = vadd.f32 %v782, %v796
        %v799 = vadd.f32 %v783, %v797
        %800 = vset.pattern.permute.xlu0 3
        %801 = vperm.xlu0 %800, %v752
        %v802 = vpop.permute.xlu0 %801
        %v804 = vlaneseq
        %v805 = vshrl.u32 %v804, 7
        %v806 = vsub.s32 3, %v805
        %v807 = vrot.slane %v750, %v806
        %v808 = vlaneseq
        %v809 = vshrl.u32 %v808, 7
        %v810 = vsub.s32 3, %v809
        %v811 = vrot.slane %v751, %v810
        %v812 = vmul.f32 %v802, %v807
        %v813 = vmul.f32 %v802, %v811
        %v814 = vadd.f32 %v798, %v812
        %v815 = vadd.f32 %v799, %v813
        %v816 = vld [vmem:[%s7] sm:$0x7]
        %818 = vset.pattern.permute.xlu0 0
        %819 = vperm.xlu0 %818, %v816
        %v820 = vpop.permute.xlu0 %819
        %v822 = vadd.f32 %v814, %v820
        %v823 = vadd.f32 %v815, %v820
        %v826 = vcombine.low %v822, %v823
        %828 = vst [vmem:[%s336] sm:$0x77] %v826
        %s829 = sand.u32 %s207, 1
        %s830 = scalar_lea.sflag [#allocation4], %s829
        %s831 = sand.u32 %s207, 1
        %s832 = smul.addr %s831, 8
        %s833 = scalar_lea.vmem [#allocation7], %s832
        // Predicated region
        $region61: #{tpu_custom_call.1} parent=51 // pred_check
          %p834 = pneg %p217
        $region62: #{tpu_custom_call.1} parent=51 // pred_check_branch
          %836 = sbr.rel (%p834) target = $region64
        $region63: #{tpu_custom_call.1} parent=51 // pred_region
          %s837 = smul.u32 2, %s26
          %s839 = ssub.s32 128, 128
          %840 = vsyncadd %s830, %s839
          %s841 = smul.addr %s837, 64
          %s842 = scalar_lea.hbm %s8, %s841
          %s844 = sshll.u32 %s833, 4
          %s845 = int_to_ptr.vmem [resolvable:$true] %s844
          %847 = dma.vmem_to_hbm [thread:$0]  %s845, 128, %s842, %s830
        $region64: #{tpu_custom_call.1} parent=51 // pred_fallthru
          _
      $region52: #{tpu_custom_call.1} parent=5 // pred_fallthru
        _
      %p848 = scmp.le.s32.totalorder 2, %s21
      // Predicated region
      $region65: #{tpu_custom_call.1} parent=5 // pred_check
        %p849 = pneg %p848
      $region66: #{tpu_custom_call.1} parent=5 // pred_check_branch
        %851 = sbr.rel (%p849) target = $region68
      $region67: #{tpu_custom_call.1} parent=5 // pred_region
        %s852 = ssub.s32 %s21, 2
        // Predicated region
        $region69: #{tpu_custom_call.1} parent=67 // pred_check
          %p853 = pneg %p223
        $region70: #{tpu_custom_call.1} parent=67 // pred_check_branch
          %855 = sbr.rel (%p853) target = $region72
        $region71: #{tpu_custom_call.1} parent=67 // pred_region
          %s856 = sand.u32 %s208, 1
          %s857 = scalar_lea.sflag [#allocation4], %s856
          %s858 = sand.u32 %s208, 1
          %s859 = smul.addr %s858, 8
          %s860 = scalar_lea.vmem [#allocation7], %s859
          %861 = dma.done %s857, 128
        $region72: #{tpu_custom_call.1} parent=67 // pred_fallthru
          _
      $region68: #{tpu_custom_call.1} parent=5 // pred_fallthru
        _
    $region6: #{tpu_custom_call.1} parent=1 // loop_footer
      %s25 = sadd.s32 1, %s21
    $region7: #{tpu_custom_call.1} parent=1 // loop_footer_branch
      %20 = sbr.rel target = $region3
    $region8: #{tpu_custom_call.1} parent=1 // loop_exit
      _
    %862 = vsyncpa [#allocation3], 1
    %s863 = scalar_lea.sflag [#allocation3], 1
    %864 = vsyncpa %s863, 1
    %865 = vsyncpa [#allocation6], 1
    %866 = vsyncpa [#allocation4], 1
    %s867 = scalar_lea.sflag [#allocation4], 1
    %868 = vsyncpa %s867, 1

</llo_original>
